<compile_context>
chip_gen: v5e
topology: v5e:2x2
jax: 0.10.0
libtpu: 0.0.40
codegen_flags: <defaults>
</compile_context>

<pallas_src>
import functools

import jax
import jax.numpy as jnp
from jax.experimental import pallas as pl
from jax.experimental.pallas import tpu as pltpu

LOG_SIG_MAX = 2.0
LOG_SIG_MIN = -20.0

LANE = 128      # f32 lane width
SUBLANE = 8     # f32 sublane height
MAX_TB = 512    # upper bound on the batch tile
SPLIT_B = 256   # batches >= this get >=2 grid steps (v7x megacore sharding)


def _round_up(x, m):
    return ((x + m - 1) // m) * m


def _mxu_align():
    # v6e / v7x MXUs are 2x256x256 -> prefer 256-aligned feature/contraction
    # dims once they exceed one 128-lane tile; v5e (4x128x128) keeps 128.
    try:
        kind = jax.devices()[0].device_kind.lower()
        if "v6" in kind or "v7" in kind:
            return 256
    except Exception:
        pass
    return LANE


def _align_dim(d, mxu):
    return LANE if d <= LANE else _round_up(d, mxu)


def _choose_tb(b):
    """Balanced batch tiles; >=2 grid steps for large batches (v7x megacore)."""
    n_tiles = max(1, -(-b // MAX_TB))
    if n_tiles == 1 and b >= SPLIT_B:
        n_tiles = 2
    tb = _round_up(-(-b // n_tiles), SUBLANE)
    return tb, tb * n_tiles


# --------------------------------------------------------------------------
# One-time parameter preparation (padding + head fusion).  Call once at init /
# after every parameter update; forward() then never touches unpadded weights.
# --------------------------------------------------------------------------
def prepare_params(params, weights_dtype=jnp.float32):
    IN, H = params["w1"].shape
    A = params["wm"].shape[1]

    mxu = _mxu_align()
    IN_P = _align_dim(IN, mxu)
    H_P = _align_dim(H, mxu)
    A_P = _round_up(A, LANE)          # HEAD_P = 2*A_P is automatically 256-aligned
    HEAD_P = 2 * A_P

    def pad2(x, shape, dtype):
        out = jnp.zeros(shape, dtype)
        return out.at[: x.shape[0], : x.shape[1]].set(x.astype(dtype))

    w1 = pad2(params["w1"], (IN_P, H_P), weights_dtype)
    b1 = pad2(params["b1"], (1, H_P), jnp.float32)
    w2 = pad2(params["w2"], (H_P, H_P), weights_dtype)
    b2 = pad2(params["b2"], (1, H_P), jnp.float32)

    # Fused heads: cols [0, A) = mean, cols [A_P, A_P + A) = log_std.
    wh = jnp.zeros((H_P, HEAD_P), weights_dtype)
    wh = wh.at[:H, :A].set(params["wm"].astype(weights_dtype))
    wh = wh.at[:H, A_P:A_P + A].set(params["ws"].astype(weights_dtype))
    bh = jnp.zeros((1, HEAD_P), jnp.float32)
    bh = bh.at[:, :A].set(params["bm"])
    bh = bh.at[:, A_P:A_P + A].set(params["bs"])

    return {
        "w1": w1, "b1": b1, "w2": w2, "b2": b2, "wh": wh, "bh": bh,
        "dims": (IN, H, A, IN_P, H_P, A_P, HEAD_P),
    }


# --------------------------------------------------------------------------
# Kernel
# --------------------------------------------------------------------------
def actor_forward_kernel(x_ref, w1_ref, b1_ref, w2_ref, b2_ref,
                         wh_ref, bh_ref, out_ref, *, a_pad):
    wdt = w1_ref.dtype
    x = x_ref[...].astype(wdt)

    # linear1 + relu (f32 accumulation, f32 bias)
    h1 = jnp.dot(x, w1_ref[...], preferred_element_type=jnp.float32) + b1_ref[...]
    h1 = jnp.maximum(h1, 0.0)

    # linear2 + relu
    h2 = jnp.dot(h1.astype(wdt), w2_ref[...],
                 preferred_element_type=jnp.float32) + b2_ref[...]
    h2 = jnp.maximum(h2, 0.0)

    # fused heads: columns [0, a_pad) = mean, [a_pad, 2*a_pad) = log_std
    heads = jnp.dot(h2.astype(wdt), wh_ref[...],
                    preferred_element_type=jnp.float32) + bh_ref[...]

    # Two lane-dense static-slice stores (a_pad is a multiple of 128):
    # mean unclamped, log_std clamped.  No iota/compare/select over the slab.
    out_ref[:, :a_pad] = heads[:, :a_pad].astype(out_ref.dtype)
    out_ref[:, a_pad:] = jnp.clip(
        heads[:, a_pad:], LOG_SIG_MIN, LOG_SIG_MAX).astype(out_ref.dtype)


# --------------------------------------------------------------------------
# Wrapper
# --------------------------------------------------------------------------
def actor_forward(state, prep):
    """Actor forward pass as one batch-tiled Pallas kernel.

    state: [B, num_inputs] float32
    prep:  output of prepare_params() (pre-padded, pre-fused weights)
    returns (mean [B, A], log_std [B, A]) float32
    """
    IN, H, A, IN_P, H_P, A_P, HEAD_P = prep["dims"]
    B = state.shape[0]
    assert state.shape[1] == IN

    TB, B_P = _choose_tb(B)
    grid = (B_P // TB,)

    # Only the activations are padded per call (cheap); weights are pre-padded.
    x_p = jnp.pad(state.astype(jnp.float32), ((0, B_P - B), (0, IN_P - IN)))

    w1, b1, w2, b2, wh, bh = (prep[k] for k in ("w1", "b1", "w2", "b2", "wh", "bh"))
    wbytes = sum(int(a.size) * a.dtype.itemsize for a in (w1, b1, w2, b2, wh, bh))

    # Scoped-VMEM budget: single-buffered weights + double-buffered x/out tiles
    # + in-flight f32 intermediates (h1, h2, heads), with ~50% headroom.
    need = (wbytes
            + 2 * TB * IN_P * 4 + 2 * TB * HEAD_P * 4
            + 2 * TB * H_P * 4 + TB * HEAD_P * 4)
    vmem_limit = int(min(64 * 1024 * 1024,
                         max(32 * 1024 * 1024, need * 3 // 2 + (2 << 20))))

    flops = 2 * B_P * (IN_P * H_P + H_P * H_P + H_P * HEAD_P)
    bytes_accessed = wbytes + 4 * B_P * (IN_P + HEAD_P)

    def resident(shape):
        # Weights never change across the batch grid: constant index_map +
        # single buffer so they are not pointlessly double-buffered in VMEM.
        return pl.BlockSpec(shape, lambda i: (0, 0), pipeline_mode=pl.Buffered(1))

    # TODO(synk): for very large H (>=4096) w2 no longer fits VMEM on v7x;
    # stream it in K-chunks (memory_space=pl.ANY + pltpu.emit_pipeline).

    out_p = pl.pallas_call(
        functools.partial(actor_forward_kernel, a_pad=A_P),
        out_shape=jax.ShapeDtypeStruct((B_P, HEAD_P), jnp.float32),
        grid=grid,
        in_specs=[
            pl.BlockSpec((TB, IN_P), lambda i: (i, 0)),   # state: batch-tiled, pipelined
            resident((IN_P, H_P)),                         # w1 (VMEM-resident)
            resident((1, H_P)),                            # b1
            resident((H_P, H_P)),                          # w2
            resident((1, H_P)),                            # b2
            resident((H_P, HEAD_P)),                       # fused head weight
            resident((1, HEAD_P)),                         # fused head bias
        ],
        out_specs=pl.BlockSpec((TB, HEAD_P), lambda i: (i, 0)),
        compiler_params=pltpu.CompilerParams(
            dimension_semantics=("parallel",),
            vmem_limit_bytes=vmem_limit),
        cost_estimate=pl.CostEstimate(
            flops=int(flops), transcendentals=0,
            bytes_accessed=int(bytes_accessed)),
    )(x_p, w1, b1, w2, b2, wh, bh)

    mean = out_p[:B, :A]
    log_std = out_p[:B, A_P:A_P + A]
    return mean, log_std


# --------------------------------------------------------------------------
# Init + plain-JAX reference (matches the PyTorch module)
# --------------------------------------------------------------------------
def xavier_uniform(key, fan_in, fan_out, gain=1.0):
    # matches torch.nn.init.xavier_uniform_ (stored here as [in, out])
    limit = gain * jnp.sqrt(6.0 / (fan_in + fan_out))
    return jax.random.uniform(key, (fan_in, fan_out), jnp.float32, -limit, limit)


def init_actor_params(key, num_inputs, num_actions, hidden_dim):
    k1, k2, k3, k4 = jax.random.split(key, 4)
    return {
        "w1": xavier_uniform(k1, num_inputs, hidden_dim),
        "b1": jnp.zeros((1, hidden_dim), jnp.float32),
        "w2": xavier_uniform(k2, hidden_dim, hidden_dim),
        "b2": jnp.zeros((1, hidden_dim), jnp.float32),
        "wm": xavier_uniform(k3, hidden_dim, num_actions),
        "bm": jnp.zeros((1, num_actions), jnp.float32),
        "ws": xavier_uniform(k4, hidden_dim, num_actions),
        "bs": jnp.zeros((1, num_actions), jnp.float32),
    }


def actor_forward_ref(state, p):
    h1 = jnp.maximum(state @ p["w1"] + p["b1"], 0.0)
    h2 = jnp.maximum(h1 @ p["w2"] + p["b2"], 0.0)
    mean = h2 @ p["wm"] + p["bm"]
    log_std = jnp.clip(h2 @ p["ws"] + p["bs"], LOG_SIG_MIN, LOG_SIG_MAX)
    return mean, log_std


if __name__ == "__main__":
    key = jax.random.PRNGKey(0)
    k_param, k_state, k_state2 = jax.random.split(key, 3)

    batch, num_inputs, num_actions, hidden_dim = 2, 16, 4, 32
    params = init_actor_params(k_param, num_inputs, num_actions, hidden_dim)
    state = jax.random.normal(k_state, (batch, num_inputs), jnp.float32)
    mean_ref, log_std_ref = actor_forward_ref(state, params)

    # 1) f32 weights: strict check vs plain-JAX reference.
    prep_f32 = prepare_params(params, weights_dtype=jnp.float32)
    mean, log_std = actor_forward(state, prep_f32)
    jax.block_until_ready((mean, log_std))
    assert mean.shape == (batch, num_actions)
    assert log_std.shape == (batch, num_actions)
    assert jnp.allclose(mean, mean_ref, atol=1e-5), "mean mismatch (f32)"
    assert jnp.allclose(log_std, log_std_ref, atol=1e-5), "log_std mismatch (f32)"

    # 2) bf16 weights (halved weight DMA / VMEM), f32 accumulation: looser tol.
    prep_bf16 = prepare_params(params, weights_dtype=jnp.bfloat16)
    mean_b, log_std_b = actor_forward(state, prep_bf16)
    jax.block_until_ready((mean_b, log_std_b))
    assert jnp.allclose(mean_b, mean_ref, atol=5e-2, rtol=5e-2), "mean mismatch (bf16)"
    assert jnp.allclose(log_std_b, log_std_ref, atol=5e-2, rtol=5e-2), "log_std mismatch (bf16)"

    # 3) multi-tile grid path (balanced batch tiles + >=2 grid steps).
    big_b = 300
    state_big = jax.random.normal(k_state2, (big_b, num_inputs), jnp.float32)
    mean_big, log_std_big = actor_forward(state_big, prep_f32)
    jax.block_until_ready((mean_big, log_std_big))
    mean_big_ref, log_std_big_ref = actor_forward_ref(state_big, params)
    assert jnp.allclose(mean_big, mean_big_ref, atol=1e-5), "mean mismatch (big batch)"
    assert jnp.allclose(log_std_big, log_std_big_ref, atol=1e-5), "log_std mismatch (big batch)"

    # TODO(synk): Actor.sample() (Normal.rsample + tanh squashing + log_prob)
    # uses host-side RNG reparameterization; only the deterministic forward()
    # is implemented in the kernel.

    print("KERNEL_OK")
</pallas_src>

<mosaic_0001>
module attributes {stable_mosaic.version = 11 : i64} {
  func.func @actor_forward_kernel(%arg0: i32, %arg1: memref<8x128xf32, #tpu.memory_space<vmem>>, %arg2: memref<128x128xf32, #tpu.memory_space<vmem>>, %arg3: memref<1x128xf32, #tpu.memory_space<vmem>>, %arg4: memref<128x128xf32, #tpu.memory_space<vmem>>, %arg5: memref<1x128xf32, #tpu.memory_space<vmem>>, %arg6: memref<128x256xf32, #tpu.memory_space<vmem>>, %arg7: memref<1x256xf32, #tpu.memory_space<vmem>>, %arg8: memref<8x256xf32, #tpu.memory_space<vmem>>) attributes {dimension_semantics = [#tpu.dimension_semantics<parallel>], iteration_bounds = array<i64: 1>, scalar_prefetch = 0 : i64, scratch_operands = 0 : i64, tpu.core_type = #tpu.core_type<tc>, window_params = [{transform_indices = @transform_0, window_bounds = array<i64: 8, 128>}, {pipeline_mode = #tpu.pipeline_mode<synchronous>, transform_indices = @transform_1, window_bounds = array<i64: 128, 128>}, {pipeline_mode = #tpu.pipeline_mode<synchronous>, transform_indices = @transform_2, window_bounds = array<i64: 1, 128>}, {pipeline_mode = #tpu.pipeline_mode<synchronous>, transform_indices = @transform_3, window_bounds = array<i64: 128, 128>}, {pipeline_mode = #tpu.pipeline_mode<synchronous>, transform_indices = @transform_4, window_bounds = array<i64: 1, 128>}, {pipeline_mode = #tpu.pipeline_mode<synchronous>, transform_indices = @transform_5, window_bounds = array<i64: 128, 256>}, {pipeline_mode = #tpu.pipeline_mode<synchronous>, transform_indices = @transform_6, window_bounds = array<i64: 1, 256>}, {transform_indices = @transform_7, window_bounds = array<i64: 8, 256>}]} {
    %c0 = arith.constant 0 : index
    %c0_0 = arith.constant 0 : index
    %0 = vector.load %arg1[%c0, %c0_0] : memref<8x128xf32, #tpu.memory_space<vmem>>, vector<8x128xf32>
    %c0_1 = arith.constant 0 : index
    %c0_2 = arith.constant 0 : index
    %1 = vector.load %arg2[%c0_1, %c0_2] : memref<128x128xf32, #tpu.memory_space<vmem>>, vector<128x128xf32>
    %cst = arith.constant dense<0.000000e+00> : vector<8x128xf32>
    %2 = tpu.matmul %0, %1, %cst {dimension_numbers = #tpu.dot_dimension_numbers<[1], [0], [0], [1], [0, 0, 1, 1], [], []>} : vector<8x128xf32>, vector<128x128xf32>, vector<8x128xf32> -> vector<8x128xf32>
    %c0_3 = arith.constant 0 : index
    %c0_4 = arith.constant 0 : index
    %3 = vector.load %arg3[%c0_3, %c0_4] : memref<1x128xf32, #tpu.memory_space<vmem>>, vector<1x128xf32>
    %4 = vector.broadcast %3 : vector<1x128xf32> to vector<8x128xf32>
    %5 = arith.addf %2, %4 : vector<8x128xf32>
    %cst_5 = arith.constant 0.000000e+00 : f32
    %6 = vector.broadcast %cst_5 : f32 to vector<8x128xf32>
    %7 = arith.maximumf %5, %6 : vector<8x128xf32>
    %c0_6 = arith.constant 0 : index
    %c0_7 = arith.constant 0 : index
    %8 = vector.load %arg4[%c0_6, %c0_7] : memref<128x128xf32, #tpu.memory_space<vmem>>, vector<128x128xf32>
    %cst_8 = arith.constant dense<0.000000e+00> : vector<8x128xf32>
    %9 = tpu.matmul %7, %8, %cst_8 {dimension_numbers = #tpu.dot_dimension_numbers<[1], [0], [0], [1], [0, 0, 1, 1], [], []>} : vector<8x128xf32>, vector<128x128xf32>, vector<8x128xf32> -> vector<8x128xf32>
    %c0_9 = arith.constant 0 : index
    %c0_10 = arith.constant 0 : index
    %10 = vector.load %arg5[%c0_9, %c0_10] : memref<1x128xf32, #tpu.memory_space<vmem>>, vector<1x128xf32>
    %11 = vector.broadcast %10 : vector<1x128xf32> to vector<8x128xf32>
    %12 = arith.addf %9, %11 : vector<8x128xf32>
    %cst_11 = arith.constant 0.000000e+00 : f32
    %13 = vector.broadcast %cst_11 : f32 to vector<8x128xf32>
    %14 = arith.maximumf %12, %13 : vector<8x128xf32>
    %c0_12 = arith.constant 0 : index
    %c0_13 = arith.constant 0 : index
    %15 = vector.load %arg6[%c0_12, %c0_13] : memref<128x256xf32, #tpu.memory_space<vmem>>, vector<128x256xf32>
    %cst_14 = arith.constant dense<0.000000e+00> : vector<8x256xf32>
    %16 = tpu.matmul %14, %15, %cst_14 {dimension_numbers = #tpu.dot_dimension_numbers<[1], [0], [0], [1], [0, 0, 1, 1], [], []>} : vector<8x128xf32>, vector<128x256xf32>, vector<8x256xf32> -> vector<8x256xf32>
    %c0_15 = arith.constant 0 : index
    %c0_16 = arith.constant 0 : index
    %17 = vector.load %arg7[%c0_15, %c0_16] : memref<1x256xf32, #tpu.memory_space<vmem>>, vector<1x256xf32>
    %18 = vector.broadcast %17 : vector<1x256xf32> to vector<8x256xf32>
    %19 = arith.addf %16, %18 : vector<8x256xf32>
    %20 = vector.extract_strided_slice %19 {offsets = [0, 0], sizes = [8, 128], strides = [1, 1]} : vector<8x256xf32> to vector<8x128xf32>
    %c0_17 = arith.constant 0 : index
    %c0_18 = arith.constant 0 : index
    %21 = vector.load %arg8[%c0_17, %c0_18] : memref<8x256xf32, #tpu.memory_space<vmem>>, vector<8x128xf32>
    tpu.vector_store %arg8[%c0_17, %c0_18], %20 {strides = array<i32>} : memref<8x256xf32, #tpu.memory_space<vmem>>, vector<8x128xf32>,
    %22 = vector.extract_strided_slice %19 {offsets = [0, 128], sizes = [8, 128], strides = [1, 1]} : vector<8x256xf32> to vector<8x128xf32>
    %cst_19 = arith.constant -2.000000e+01 : f32
    %cst_20 = arith.constant 2.000000e+00 : f32
    %23 = vector.broadcast %cst_19 : f32 to vector<8x128xf32>
    %24 = arith.maximumf %23, %22 : vector<8x128xf32>
    %25 = vector.broadcast %cst_20 : f32 to vector<8x128xf32>
    %26 = arith.minimumf %25, %24 : vector<8x128xf32>
    %c0_21 = arith.constant 0 : index
    %c128 = arith.constant 128 : index
    %27 = vector.load %arg8[%c0_21, %c128] : memref<8x256xf32, #tpu.memory_space<vmem>>, vector<8x128xf32>
    tpu.vector_store %arg8[%c0_21, %c128], %26 {strides = array<i32>} : memref<8x256xf32, #tpu.memory_space<vmem>>, vector<8x128xf32>,
    return
  }
  func.func @transform_0(%arg0: i32) -> (i32, i32) {
    %c0_i32 = arith.constant 0 : i32
    %c0_i32_0 = arith.constant 0 : i32
    return %arg0, %c0_i32 : i32, i32
  }
  func.func @transform_1(%arg0: i32) -> (i32, i32) {
    %c0_i32 = arith.constant 0 : i32
    %c0_i32_0 = arith.constant 0 : i32
    %c0_i32_1 = arith.constant 0 : i32
    return %c0_i32, %c0_i32_0 : i32, i32
  }
  func.func @transform_2(%arg0: i32) -> (i32, i32) {
    %c0_i32 = arith.constant 0 : i32
    %c0_i32_0 = arith.constant 0 : i32
    %c0_i32_1 = arith.constant 0 : i32
    return %c0_i32, %c0_i32_0 : i32, i32
  }
  func.func @transform_3(%arg0: i32) -> (i32, i32) {
    %c0_i32 = arith.constant 0 : i32
    %c0_i32_0 = arith.constant 0 : i32
    %c0_i32_1 = arith.constant 0 : i32
    return %c0_i32, %c0_i32_0 : i32, i32
  }
  func.func @transform_4(%arg0: i32) -> (i32, i32) {
    %c0_i32 = arith.constant 0 : i32
    %c0_i32_0 = arith.constant 0 : i32
    %c0_i32_1 = arith.constant 0 : i32
    return %c0_i32, %c0_i32_0 : i32, i32
  }
  func.func @transform_5(%arg0: i32) -> (i32, i32) {
    %c0_i32 = arith.constant 0 : i32
    %c0_i32_0 = arith.constant 0 : i32
    %c0_i32_1 = arith.constant 0 : i32
    return %c0_i32, %c0_i32_0 : i32, i32
  }
  func.func @transform_6(%arg0: i32) -> (i32, i32) {
    %c0_i32 = arith.constant 0 : i32
    %c0_i32_0 = arith.constant 0 : i32
    %c0_i32_1 = arith.constant 0 : i32
    return %c0_i32, %c0_i32_0 : i32, i32
  }
  func.func @transform_7(%arg0: i32) -> (i32, i32) {
    %c0_i32 = arith.constant 0 : i32
    %c0_i32_0 = arith.constant 0 : i32
    return %arg0, %c0_i32 : i32, i32
  }
}

</mosaic_0001>

<llo_original>
// kernel: tpu_custom_call.1
$region0: #{tpu_custom_call.1}
  #allocation0 [shape = 'u32[]', space=smem, size = 0x4, offset = 0x4, fixed_abs, tag = 'smem constant byte address 0x4 - core index']
  #allocation1 [shape = 'u32[72,128]{1,0:T(1,128)}', space=vmem, size = 0x9000, scoped, tag = 'internal scratch']
  %s0 = inlined_call_operand.hbm [shape: f32[8,128], index: 0, kind: input, shape index: {}]
  %s1 = inlined_call_operand.hbm [shape: f32[128,128], index: 1, kind: input, shape index: {}]
  %s2 = inlined_call_operand.vmem [shape: f32[1,128], index: 2, kind: input, shape index: {}]
  %s3 = inlined_call_operand.hbm [shape: f32[128,128], index: 3, kind: input, shape index: {}]
  %s4 = inlined_call_operand.hbm [shape: f32[1,128], index: 4, kind: input, shape index: {}]
  %s5 = inlined_call_operand.hbm [shape: f32[128,256], index: 5, kind: input, shape index: {}]
  %s6 = inlined_call_operand.vmem [shape: f32[1,256], index: 6, kind: input, shape index: {}]
  %s7 = inlined_call_operand.hbm [shape: f32[8,256], index: 7, kind: output, shape index: {}]
  %s8 = sld [smem:[#allocation0]]
  $region58: #{tpu_custom_call.1} parent=0
    _
  %s10 = ssub.s32 1, %s8
  %s11 = scalar_select 0, %s10, %s8
  $region1: #{tpu_custom_call.1} parent=0
    #allocation2 [shape = 'u8[4096]{0}', space=vmem, size = 0x1000, scoped, tag = 'input window, operand 0, single buffered']
    #allocation3 [shape = 's32[1]{0}', space=sflag, size = 0x4, scoped, tag = 'scoped memory for tpu_custom_call.1']
    #allocation4 [shape = 's32[1]{0}', space=sflag, size = 0x4, scoped, tag = 'scoped memory for tpu_custom_call.1']
    #allocation5 [shape = 'u8[65536]{0}', space=vmem, size = 0x10000, scoped, tag = 'input window, operand 1, single buffered']
    #allocation6 [shape = 's32[1]{0}', space=sflag, size = 0x4, scoped, tag = 'scoped memory for tpu_custom_call.1']
    #allocation7 [shape = 'u8[65536]{0}', space=vmem, size = 0x10000, scoped, tag = 'input window, operand 3, single buffered']
    #allocation8 [shape = 'u8[512]{0}', space=vmem, size = 0x400, scoped, tag = 'input window, operand 4, single buffered']
    #allocation9 [shape = 's32[1]{0}', space=sflag, size = 0x4, scoped, tag = 'scoped memory for tpu_custom_call.1']
    #allocation10 [shape = 'u8[131072]{0}', space=vmem, size = 0x20000, scoped, tag = 'input window, operand 5, single buffered']
    #allocation11 [shape = 'u8[8192]{0}', space=vmem, size = 0x2000, scoped, tag = 'output window, operand 0, single buffered']
    %12 = vsyncpa [#allocation3], 0
    %13 = vsyncpa [#allocation6], 0
    %14 = vsyncpa [#allocation9], 0
    %15 = vsyncpa [#allocation4], 0
    // Predicated region
    $region2: #{tpu_custom_call.1} parent=1 // pred_check
      _
    $region3: #{tpu_custom_call.1} parent=1 // pred_check_branch
      %17 = sbr.rel (0) target = $region5
    $region4: #{tpu_custom_call.1} parent=1 // pred_region
      %19 = vsyncadd [#allocation3], 0
      %s21 = sshll.u32 %s0, 4
      %s22 = int_to_ptr.hbm [resolvable:$true] %s21
      %s23 = sshll.u32 [#allocation2], 4
      %s24 = int_to_ptr.vmem [resolvable:$true] %s23
      %26 = dma.hbm_to_vmem [thread:$0]  %s22, 128, %s24, [#allocation3]
    $region5: #{tpu_custom_call.1} parent=1 // pred_fallthru
      _
    // Predicated region
    $region6: #{tpu_custom_call.1} parent=1 // pred_check
      _
    $region7: #{tpu_custom_call.1} parent=1 // pred_check_branch
      %28 = sbr.rel (0) target = $region9
    $region8: #{tpu_custom_call.1} parent=1 // pred_region
      %30 = vsyncadd [#allocation6], 0
      %s31 = sshll.u32 %s1, 4
      %s32 = int_to_ptr.hbm [resolvable:$true] %s31
      %s33 = sshll.u32 [#allocation5], 4
      %s34 = int_to_ptr.vmem [resolvable:$true] %s33
      %39 = dma.hbm_to_vmem [thread:$0]  %s32, 2048, %s34, [#allocation6], 128, 128, 8
    $region9: #{tpu_custom_call.1} parent=1 // pred_fallthru
      _
    // Predicated region
    $region10: #{tpu_custom_call.1} parent=1 // pred_check
      _
    $region11: #{tpu_custom_call.1} parent=1 // pred_check_branch
      %41 = sbr.rel (0) target = $region13
    $region12: #{tpu_custom_call.1} parent=1 // pred_region
      _
    $region13: #{tpu_custom_call.1} parent=1 // pred_fallthru
      _
    // Predicated region
    $region14: #{tpu_custom_call.1} parent=1 // pred_check
      _
    $region15: #{tpu_custom_call.1} parent=1 // pred_check_branch
      %43 = sbr.rel (0) target = $region17
    $region16: #{tpu_custom_call.1} parent=1 // pred_region
      %45 = vsyncadd [#allocation6], 0
      %s46 = sshll.u32 %s3, 4
      %s47 = int_to_ptr.hbm [resolvable:$true] %s46
      %s48 = sshll.u32 [#allocation7], 4
      %s49 = int_to_ptr.vmem [resolvable:$true] %s48
      %54 = dma.hbm_to_vmem [thread:$0]  %s47, 2048, %s49, [#allocation6], 128, 128, 8
    $region17: #{tpu_custom_call.1} parent=1 // pred_fallthru
      _
    // Predicated region
    $region18: #{tpu_custom_call.1} parent=1 // pred_check
      _
    $region19: #{tpu_custom_call.1} parent=1 // pred_check_branch
      %56 = sbr.rel (0) target = $region21
    $region20: #{tpu_custom_call.1} parent=1 // pred_region
      %58 = vsyncadd [#allocation9], 0
      %s60 = sshll.u32 %s4, 4
      %s61 = int_to_ptr.hbm [resolvable:$true] %s60
      %s62 = sshll.u32 [#allocation8], 4
      %s63 = int_to_ptr.vmem [resolvable:$true] %s62
      %65 = dma.hbm_to_vmem [thread:$0]  %s61, 16, %s63, [#allocation9]
    $region21: #{tpu_custom_call.1} parent=1 // pred_fallthru
      _
    // Predicated region
    $region22: #{tpu_custom_call.1} parent=1 // pred_check
      _
    $region23: #{tpu_custom_call.1} parent=1 // pred_check_branch
      %67 = sbr.rel (0) target = $region25
    $region24: #{tpu_custom_call.1} parent=1 // pred_region
      %69 = vsyncadd [#allocation9], 0
      %s70 = sshll.u32 %s5, 4
      %s71 = int_to_ptr.hbm [resolvable:$true] %s70
      %s72 = sshll.u32 [#allocation10], 4
      %s73 = int_to_ptr.vmem [resolvable:$true] %s72
      %78 = dma.hbm_to_vmem [thread:$0]  %s71, 4096, %s73, [#allocation9], 256, 256, 16
    $region25: #{tpu_custom_call.1} parent=1 // pred_fallthru
      _
    // Predicated region
    $region26: #{tpu_custom_call.1} parent=1 // pred_check
      _
    $region27: #{tpu_custom_call.1} parent=1 // pred_check_branch
      %80 = sbr.rel (0) target = $region29
    $region28: #{tpu_custom_call.1} parent=1 // pred_region
      _
    $region29: #{tpu_custom_call.1} parent=1 // pred_fallthru
      _
    // Predicated region
    $region30: #{tpu_custom_call.1} parent=1 // pred_check
      _
    $region31: #{tpu_custom_call.1} parent=1 // pred_check_branch
      %82 = sbr.rel (0) target = $region33
    $region32: #{tpu_custom_call.1} parent=1 // pred_region
      %84 = dma.done [#allocation3], 128
    $region33: #{tpu_custom_call.1} parent=1 // pred_fallthru
      _
    // Predicated region
    $region34: #{tpu_custom_call.1} parent=1 // pred_check
      _
    $region35: #{tpu_custom_call.1} parent=1 // pred_check_branch
      %86 = sbr.rel (0) target = $region37
    $region36: #{tpu_custom_call.1} parent=1 // pred_region
      %88 = dma.done [#allocation6], 2048
    $region37: #{tpu_custom_call.1} parent=1 // pred_fallthru
      _
    // Predicated region
    $region38: #{tpu_custom_call.1} parent=1 // pred_check
      _
    $region39: #{tpu_custom_call.1} parent=1 // pred_check_branch
      %90 = sbr.rel (0) target = $region41
    $region40: #{tpu_custom_call.1} parent=1 // pred_region
      %92 = dma.done [#allocation6], 2048
    $region41: #{tpu_custom_call.1} parent=1 // pred_fallthru
      _
    // Predicated region
    $region42: #{tpu_custom_call.1} parent=1 // pred_check
      _
    $region43: #{tpu_custom_call.1} parent=1 // pred_check_branch
      %94 = sbr.rel (0) target = $region45
    $region44: #{tpu_custom_call.1} parent=1 // pred_region
      %96 = dma.done [#allocation9], 16
    $region45: #{tpu_custom_call.1} parent=1 // pred_fallthru
      _
    // Predicated region
    $region46: #{tpu_custom_call.1} parent=1 // pred_check
      _
    $region47: #{tpu_custom_call.1} parent=1 // pred_check_branch
      %98 = sbr.rel (0) target = $region49
    $region48: #{tpu_custom_call.1} parent=1 // pred_region
      %100 = dma.done [#allocation9], 4096
    $region49: #{tpu_custom_call.1} parent=1 // pred_fallthru
      _
    %v101 = vld [vmem:[#allocation2] sm:$0xff]
    %v102 = vld [vmem:[#allocation5] sm:$0xff]
    %v103 = vld [vmem:[#allocation5 + $0x8] sm:$0xff]
    %v104 = vld [vmem:[#allocation5 + $0x10] sm:$0xff]
    %v105 = vld [vmem:[#allocation5 + $0x18] sm:$0xff]
    %v106 = vld [vmem:[#allocation5 + $0x20] sm:$0xff]
    %v107 = vld [vmem:[#allocation5 + $0x28] sm:$0xff]
    %v108 = vld [vmem:[#allocation5 + $0x30] sm:$0xff]
    %v109 = vld [vmem:[#allocation5 + $0x38] sm:$0xff]
    %v110 = vld [vmem:[#allocation5 + $0x40] sm:$0xff]
    %v111 = vld [vmem:[#allocation5 + $0x48] sm:$0xff]
    %v112 = vld [vmem:[#allocation5 + $0x50] sm:$0xff]
    %v113 = vld [vmem:[#allocation5 + $0x58] sm:$0xff]
    %v114 = vld [vmem:[#allocation5 + $0x60] sm:$0xff]
    %v115 = vld [vmem:[#allocation5 + $0x68] sm:$0xff]
    %v116 = vld [vmem:[#allocation5 + $0x70] sm:$0xff]
    %v117 = vld [vmem:[#allocation5 + $0x78] sm:$0xff]
    %v118 = vld [vmem:[%s2] sm:$0x1]
    %v120 = vperm.slane %v118, 0
    %122 = vmatpush.msra.mxu0 %v117
    %123 = vmatpush.msra.mxu0 %v116
    %124 = vmatpush.msra.mxu0 %v115
    %125 = vmatpush.msra.mxu0 %v114
    %126 = vmatpush.msra.mxu0 %v113
    %127 = vmatpush.msra.mxu0 %v112
    %128 = vmatpush.msra.mxu0 %v111
    %129 = vmatpush.msra.mxu0 %v110
    %130 = vmatpush.msra.mxu0 %v109
    %131 = vmatpush.msra.mxu0 %v108
    %132 = vmatpush.msra.mxu0 %v107
    %133 = vmatpush.msra.mxu0 %v106
    %134 = vmatpush.msra.mxu0 %v105
    %135 = vmatpush.msra.mxu0 %v104
    %136 = vmatpush.msra.mxu0 %v103
    %137 = vmatpush.msra.mxu0 %v102
    %138 = vmatmul.f32.gmra.mxu0 %v101
    %v139 = vpop.f32.mrf.mxu0
    %v140 = vadd.f32 %v120, %v139
    %141 = vdwg.mxu0
    %v142 = vmax.f32 %v140, 0.0
    %v143 = vld [vmem:[#allocation7] sm:$0xff]
    %v144 = vld [vmem:[#allocation7 + $0x8] sm:$0xff]
    %v145 = vld [vmem:[#allocation7 + $0x10] sm:$0xff]
    %v146 = vld [vmem:[#allocation7 + $0x18] sm:$0xff]
    %v147 = vld [vmem:[#allocation7 + $0x20] sm:$0xff]
    %v148 = vld [vmem:[#allocation7 + $0x28] sm:$0xff]
    %v149 = vld [vmem:[#allocation7 + $0x30] sm:$0xff]
    %v150 = vld [vmem:[#allocation7 + $0x38] sm:$0xff]
    %v151 = vld [vmem:[#allocation7 + $0x40] sm:$0xff]
    %v152 = vld [vmem:[#allocation7 + $0x48] sm:$0xff]
    %v153 = vld [vmem:[#allocation7 + $0x50] sm:$0xff]
    %v154 = vld [vmem:[#allocation7 + $0x58] sm:$0xff]
    %v155 = vld [vmem:[#allocation7 + $0x60] sm:$0xff]
    %v156 = vld [vmem:[#allocation7 + $0x68] sm:$0xff]
    %v157 = vld [vmem:[#allocation7 + $0x70] sm:$0xff]
    %v158 = vld [vmem:[#allocation7 + $0x78] sm:$0xff]
    %v159 = vld [vmem:[#allocation8] sm:$0x1]
    %v161 = vperm.slane %v159, 0
    %163 = vmatpush.msra.mxu0 %v158
    %164 = vmatpush.msra.mxu0 %v157
    %165 = vmatpush.msra.mxu0 %v156
    %166 = vmatpush.msra.mxu0 %v155
    %167 = vmatpush.msra.mxu0 %v154
    %168 = vmatpush.msra.mxu0 %v153
    %169 = vmatpush.msra.mxu0 %v152
    %170 = vmatpush.msra.mxu0 %v151
    %171 = vmatpush.msra.mxu0 %v150
    %172 = vmatpush.msra.mxu0 %v149
    %173 = vmatpush.msra.mxu0 %v148
    %174 = vmatpush.msra.mxu0 %v147
    %175 = vmatpush.msra.mxu0 %v146
    %176 = vmatpush.msra.mxu0 %v145
    %177 = vmatpush.msra.mxu0 %v144
    %178 = vmatpush.msra.mxu0 %v143
    %179 = vmatmul.f32.gmra.mxu0 %v142
    %v180 = vpop.f32.mrf.mxu0
    %v181 = vadd.f32 %v161, %v180
    %182 = vdwg.mxu0
    %v183 = vmax.f32 %v181, 0.0
    %v184 = vld [vmem:[#allocation10] sm:$0xff]
    %v185 = vld [vmem:[#allocation10 + $0x8] sm:$0xff]
    %v186 = vld [vmem:[#allocation10 + $0x10] sm:$0xff]
    %v187 = vld [vmem:[#allocation10 + $0x18] sm:$0xff]
    %v188 = vld [vmem:[#allocation10 + $0x20] sm:$0xff]
    %v189 = vld [vmem:[#allocation10 + $0x28] sm:$0xff]
    %v190 = vld [vmem:[#allocation10 + $0x30] sm:$0xff]
    %v191 = vld [vmem:[#allocation10 + $0x38] sm:$0xff]
    %v192 = vld [vmem:[#allocation10 + $0x40] sm:$0xff]
    %v193 = vld [vmem:[#allocation10 + $0x48] sm:$0xff]
    %v194 = vld [vmem:[#allocation10 + $0x50] sm:$0xff]
    %v195 = vld [vmem:[#allocation10 + $0x58] sm:$0xff]
    %v196 = vld [vmem:[#allocation10 + $0x60] sm:$0xff]
    %v197 = vld [vmem:[#allocation10 + $0x68] sm:$0xff]
    %v198 = vld [vmem:[#allocation10 + $0x70] sm:$0xff]
    %v199 = vld [vmem:[#allocation10 + $0x78] sm:$0xff]
    %v200 = vld [vmem:[#allocation10 + $0x80] sm:$0xff]
    %v201 = vld [vmem:[#allocation10 + $0x88] sm:$0xff]
    %v202 = vld [vmem:[#allocation10 + $0x90] sm:$0xff]
    %v203 = vld [vmem:[#allocation10 + $0x98] sm:$0xff]
    %v204 = vld [vmem:[#allocation10 + $0xa0] sm:$0xff]
    %v205 = vld [vmem:[#allocation10 + $0xa8] sm:$0xff]
    %v206 = vld [vmem:[#allocation10 + $0xb0] sm:$0xff]
    %v207 = vld [vmem:[#allocation10 + $0xb8] sm:$0xff]
    %v208 = vld [vmem:[#allocation10 + $0xc0] sm:$0xff]
    %v209 = vld [vmem:[#allocation10 + $0xc8] sm:$0xff]
    %v210 = vld [vmem:[#allocation10 + $0xd0] sm:$0xff]
    %v211 = vld [vmem:[#allocation10 + $0xd8] sm:$0xff]
    %v212 = vld [vmem:[#allocation10 + $0xe0] sm:$0xff]
    %v213 = vld [vmem:[#allocation10 + $0xe8] sm:$0xff]
    %v214 = vld [vmem:[#allocation10 + $0xf0] sm:$0xff]
    %v215 = vld [vmem:[#allocation10 + $0xf8] sm:$0xff]
    %v216 = vld [vmem:[%s6] sm:$0x3]
    %v218 = vperm.slane %v216, 0
    %v219 = vperm.slane %v216, 1
    %222 = vmatpush.msra.mxu0 %v214
    %223 = vmatpush.msra.mxu0 %v212
    %224 = vmatpush.msra.mxu0 %v210
    %225 = vmatpush.msra.mxu0 %v208
    %226 = vmatpush.msra.mxu0 %v206
    %227 = vmatpush.msra.mxu0 %v204
    %228 = vmatpush.msra.mxu0 %v202
    %229 = vmatpush.msra.mxu0 %v200
    %230 = vmatpush.msra.mxu0 %v198
    %231 = vmatpush.msra.mxu0 %v196
    %232 = vmatpush.msra.mxu0 %v194
    %233 = vmatpush.msra.mxu0 %v192
    %234 = vmatpush.msra.mxu0 %v190
    %235 = vmatpush.msra.mxu0 %v188
    %236 = vmatpush.msra.mxu0 %v186
    %237 = vmatpush.msra.mxu0 %v184
    %238 = vmatmul.f32.gmra.mxu0 %v183
    %v239 = vpop.f32.mrf.mxu0
    %v240 = vadd.f32 %v218, %v239
    %241 = vdwg.mxu0
    %242 = vmatpush.msra.mxu0 %v215
    %243 = vmatpush.msra.mxu0 %v213
    %244 = vmatpush.msra.mxu0 %v211
    %245 = vmatpush.msra.mxu0 %v209
    %246 = vmatpush.msra.mxu0 %v207
    %247 = vmatpush.msra.mxu0 %v205
    %248 = vmatpush.msra.mxu0 %v203
    %249 = vmatpush.msra.mxu0 %v201
    %250 = vmatpush.msra.mxu0 %v199
    %251 = vmatpush.msra.mxu0 %v197
    %252 = vmatpush.msra.mxu0 %v195
    %253 = vmatpush.msra.mxu0 %v193
    %254 = vmatpush.msra.mxu0 %v191
    %255 = vmatpush.msra.mxu0 %v189
    %256 = vmatpush.msra.mxu0 %v187
    %257 = vmatpush.msra.mxu0 %v185
    %258 = vmatmul.f32.gmra.mxu0 %v183
    %v259 = vpop.f32.mrf.mxu0
    %v260 = vadd.f32 %v219, %v259
    %261 = vdwg.mxu0
    %262 = vst [vmem:[#allocation11] sm:$0xff] %v240
    %v263 = vmax.f32 %v260, -20.0
    %v264 = vmin.f32 %v263, 2.0
    %265 = vst [vmem:[#allocation11 + $0x8] sm:$0xff] %v264
    // Predicated region
    $region50: #{tpu_custom_call.1} parent=1 // pred_check
      _
    $region51: #{tpu_custom_call.1} parent=1 // pred_check_branch
      %267 = sbr.rel (0) target = $region53
    $region52: #{tpu_custom_call.1} parent=1 // pred_region
      %269 = vsyncadd [#allocation4], 0
      %s271 = sshll.u32 [#allocation11], 4
      %s272 = int_to_ptr.vmem [resolvable:$true] %s271
      %s273 = sshll.u32 %s7, 4
      %s274 = int_to_ptr.hbm [resolvable:$true] %s273
      %276 = dma.vmem_to_hbm [thread:$0]  %s272, 256, %s274, [#allocation4]
    $region53: #{tpu_custom_call.1} parent=1 // pred_fallthru
      _
    // Predicated region
    $region54: #{tpu_custom_call.1} parent=1 // pred_check
      _
    $region55: #{tpu_custom_call.1} parent=1 // pred_check_branch
      %278 = sbr.rel (0) target = $region57
    $region56: #{tpu_custom_call.1} parent=1 // pred_region
      %280 = dma.done [#allocation4], 256
    $region57: #{tpu_custom_call.1} parent=1 // pred_fallthru
      _
    %281 = vsyncpa [#allocation3], 1
    %282 = vsyncpa [#allocation6], 1
    %283 = vsyncpa [#allocation9], 1
    %284 = vsyncpa [#allocation4], 1

</llo_original>
